<compile_context>
chip_gen: v6e
topology: v6e:2x2x1
jax: 0.10.0
libtpu: 0.0.40
codegen_flags: <defaults>
</compile_context>

<pallas_src>
import jax
import jax.numpy as jnp
from jax.experimental import pallas as pl
from jax.experimental.pallas import tpu as pltpu


def _round_up(x, m):
    return ((x + m - 1) // m) * m


def _vmem_capacity_bytes():
    try:
        cap = getattr(pltpu.get_tpu_info(), "vmem_capacity_bytes", None)
        if cap:
            return int(cap)
    except Exception:
        pass
    return 64 * 1024 * 1024  # conservative fallback (v7x per-TC VMEM)


def _ffn_kernel_inplace(x_ref, w1_ref, b1_ref, w2_ref, b2_ref, o_ref):
    # f32-output variant: o_ref's block index (i, 0) is constant across the hidden
    # axis, so the output block stays resident in VMEM and doubles as the accumulator.
    k = pl.program_id(1)

    @pl.when(k == 0)
    def _():
        o_ref[...] = jnp.broadcast_to(b2_ref[...], o_ref.shape)

    h = jnp.dot(x_ref[...], w1_ref[...], preferred_element_type=jnp.float32)
    h = h + b1_ref[...]
    h = h * jax.nn.sigmoid(h)          # SiLU in f32; sigmoid uses the EUP slot
    # Dropout(p=0.0) -> identity (elided).
    o_ref[...] += jnp.dot(h.astype(w2_ref.dtype), w2_ref[...],
                          preferred_element_type=jnp.float32)


def _ffn_kernel_acc(x_ref, w1_ref, b1_ref, w2_ref, b2_ref, o_ref, acc_ref):
    # Non-f32-output variant: accumulate in an f32 VMEM scratch, cast once at the end.
    k = pl.program_id(1)

    @pl.when(k == 0)
    def _():
        acc_ref[...] = jnp.broadcast_to(b2_ref[...], acc_ref.shape)

    h = jnp.dot(x_ref[...], w1_ref[...], preferred_element_type=jnp.float32)
    h = h + b1_ref[...]
    h = h * jax.nn.sigmoid(h)
    # Dropout(p=0.0) -> identity (elided).
    acc_ref[...] += jnp.dot(h.astype(w2_ref.dtype), w2_ref[...],
                            preferred_element_type=jnp.float32)

    @pl.when(k == pl.num_programs(1) - 1)
    def _():
        o_ref[...] = acc_ref[...].astype(o_ref.dtype)


def feed_forward(x, w1, b1, w2, b2, *, compute_dtype=jnp.bfloat16, tm=512, th=512):
    """x: (..., dim). w1: (dim, hidden), b1: (hidden,), w2: (hidden, dim), b2: (dim,).

    compute_dtype: dtype fed to the MXU (default bfloat16; pass jnp.float32 for
    parity testing).  SiLU and accumulation are always float32; output dtype == x.dtype.
    tm / th: token / hidden tile sizes; auto-shrunk to fit the device's VMEM.
    """
    orig_shape = x.shape
    dim = orig_shape[-1]
    hidden = w1.shape[1]

    cd = jnp.dtype(compute_dtype)
    out_dtype = jnp.dtype(x.dtype)
    cd_bytes = cd.itemsize
    out_bytes = out_dtype.itemsize
    use_scratch = out_dtype != jnp.dtype(jnp.float32)

    x2d = x.reshape(-1, dim)
    n = x2d.shape[0]

    # Lane-dense feature padding (multiples of 128 -> unmasked stores, full vregs).
    dim_p = _round_up(dim, 128)
    hidden_128 = _round_up(hidden, 128)

    # Hidden tile: multiple of 128, no larger than the padded hidden dim.
    th = max(128, min(_round_up(th, 128), hidden_128))

    # Token tile: bf16 packs 2 rows per sublane -> use multiples of 16 rows.
    sub = 16 if cd_bytes <= 2 else 8
    tm_eff = min(_round_up(tm, sub), _round_up(n, sub))

    # Fit the double-buffered tile footprint in VMEM (v7x: 64 MiB, v5e/v6e: 128 MiB).
    vmem_cap = _vmem_capacity_bytes()
    budget = int(vmem_cap * 0.7)

    def footprint(tm_, th_):
        buffered = 2 * (tm_ * dim_p * cd_bytes       # x tile
                        + dim_p * th_ * cd_bytes     # W1 column block
                        + th_ * 4                    # b1 block (f32)
                        + th_ * dim_p * cd_bytes     # W2 row block
                        + dim_p * 4                  # b2 (f32)
                        + tm_ * dim_p * out_bytes)   # output tile
        if use_scratch:
            buffered += tm_ * dim_p * 4              # f32 accumulator scratch
        return buffered

    while footprint(tm_eff, th) > budget:
        if tm_eff > sub:
            tm_eff = max(sub, _round_up(tm_eff // 2, sub))
        elif th > 128:
            th = max(128, _round_up(th // 2, 128))
        else:
            break

    hidden_p = _round_up(hidden_128, th)
    n_p = _round_up(n, tm_eff)
    grid = (n_p // tm_eff, hidden_p // th)

    # Pad / cast only when needed (no-op for already-aligned operands; weight padding
    # can equivalently be hoisted to parameter-init time by the caller).
    def pad2d(a, rows, cols, dtype):
        if a.shape == (rows, cols) and a.dtype == dtype:
            return a
        return jnp.zeros((rows, cols), dtype).at[:a.shape[0], :a.shape[1]].set(
            a.astype(dtype))

    x_p = pad2d(x2d, n_p, dim_p, cd)
    w1_p = pad2d(w1, dim_p, hidden_p, cd)
    w2_p = pad2d(w2, hidden_p, dim_p, cd)
    b1_p = pad2d(b1.reshape(1, -1), 1, hidden_p, jnp.float32)
    b2_p = pad2d(b2.reshape(1, -1), 1, dim_p, jnp.float32)

    kernel = _ffn_kernel_acc if use_scratch else _ffn_kernel_inplace
    scratch = [pltpu.VMEM((tm_eff, dim_p), jnp.float32)] if use_scratch else []

    out = pl.pallas_call(
        kernel,
        out_shape=jax.ShapeDtypeStruct((n_p, dim_p), out_dtype),
        grid_spec=pltpu.PrefetchScalarGridSpec(
            num_scalar_prefetch=0,
            grid=grid,
            in_specs=[
                # x tile: new block per token step, constant across hidden steps.
                pl.BlockSpec((tm_eff, dim_p), lambda i, k: (i, 0)),
                # W1 column block / b1 block: streamed over the hidden axis.
                pl.BlockSpec((dim_p, th), lambda i, k: (0, k)),
                pl.BlockSpec((1, th), lambda i, k: (0, k)),
                # W2 row block: streamed over the hidden axis.
                pl.BlockSpec((th, dim_p), lambda i, k: (k, 0)),
                # b2: resident.
                pl.BlockSpec((1, dim_p), lambda i, k: (0, 0)),
            ],
            out_specs=pl.BlockSpec((tm_eff, dim_p), lambda i, k: (i, 0)),
            scratch_shapes=scratch,
        ),
        compiler_params=pltpu.CompilerParams(
            dimension_semantics=("parallel", "arbitrary"),
            vmem_limit_bytes=int(vmem_cap * 0.9)),
    )(x_p, w1_p, b1_p, w2_p, b2_p)

    return out[:n, :dim].reshape(orig_shape)


def init_params(key, dim, hidden_dim, dtype=jnp.float32):
    # Deterministic init mimicking torch.nn.Linear (uniform +/- 1/sqrt(fan_in)).
    k1, k2, k3, k4 = jax.random.split(key, 4)
    lim1 = 1.0 / (dim ** 0.5)
    lim2 = 1.0 / (hidden_dim ** 0.5)
    w1 = jax.random.uniform(k1, (dim, hidden_dim), dtype, -lim1, lim1)
    b1 = jax.random.uniform(k2, (hidden_dim,), dtype, -lim1, lim1)
    w2 = jax.random.uniform(k3, (hidden_dim, dim), dtype, -lim2, lim2)
    b2 = jax.random.uniform(k4, (dim,), dtype, -lim2, lim2)
    return w1, b1, w2, b2


def feed_forward_ref(x, w1, b1, w2, b2):
    hp = jax.lax.Precision.HIGHEST
    h = jnp.dot(x, w1, precision=hp) + b1
    h = h * jax.nn.sigmoid(h)
    return jnp.dot(h, w2, precision=hp) + b2


if __name__ == "__main__":
    key = jax.random.PRNGKey(0)
    kx, kp, kx2, kp2 = jax.random.split(key, 4)

    # --- Small module-consistent shapes (dim=32, hidden=64) --------------------
    batch, seq, dim, hidden_dim = 2, 8, 32, 64
    x = jax.random.normal(kx, (batch, seq, dim), jnp.float32)
    w1, b1, w2, b2 = init_params(kp, dim, hidden_dim)
    ref = feed_forward_ref(x, w1, b1, w2, b2)

    # f32 MXU path (parity check).
    out_f32 = jax.block_until_ready(
        feed_forward(x, w1, b1, w2, b2, compute_dtype=jnp.float32))
    assert out_f32.shape == x.shape
    assert jnp.allclose(out_f32, ref, atol=2e-2, rtol=2e-2), "f32 small-shape mismatch"

    # Default bf16 MXU path (f32 SiLU + accumulation); loosened tolerance.
    out_bf16 = jax.block_until_ready(feed_forward(x, w1, b1, w2, b2))
    assert jnp.allclose(out_bf16, ref, atol=8e-2, rtol=8e-2), "bf16 small-shape mismatch"

    # --- Multi-tile shapes: 2 token tiles x 2 hidden tiles ----------------------
    batch2, seq2, dim2, hidden2 = 4, 128, 256, 1024
    x2 = jax.random.normal(kx2, (batch2, seq2, dim2), jnp.float32)
    p2 = init_params(kp2, dim2, hidden2)
    ref2 = feed_forward_ref(x2, *p2)

    out2_f32 = jax.block_until_ready(
        feed_forward(x2, *p2, compute_dtype=jnp.float32, tm=256, th=512))
    assert out2_f32.shape == x2.shape
    assert jnp.allclose(out2_f32, ref2, atol=2e-2, rtol=2e-2), "multi-tile f32 mismatch"

    out2_bf16 = jax.block_until_ready(feed_forward(x2, *p2, tm=256, th=512))
    assert jnp.allclose(out2_bf16, ref2, atol=8e-2, rtol=8e-2), "multi-tile bf16 mismatch"

    print("KERNEL_OK")
</pallas_src>

<mosaic_0001>
module attributes {stable_mosaic.version = 11 : i64} {
  func.func @_ffn_kernel_inplace(%arg0: i32, %arg1: i32, %arg2: memref<16x128xf32, #tpu.memory_space<vmem>>, %arg3: memref<128x128xf32, #tpu.memory_space<vmem>>, %arg4: memref<1x128xf32, #tpu.memory_space<vmem>>, %arg5: memref<128x128xf32, #tpu.memory_space<vmem>>, %arg6: memref<1x128xf32, #tpu.memory_space<vmem>>, %arg7: memref<16x128xf32, #tpu.memory_space<vmem>>) attributes {dimension_semantics = [#tpu.dimension_semantics<parallel>, #tpu.dimension_semantics<arbitrary>], iteration_bounds = array<i64: 1, 1>, scalar_prefetch = 0 : i64, scratch_operands = 0 : i64, tpu.core_type = #tpu.core_type<tc>, window_params = [{transform_indices = @transform_0, window_bounds = array<i64: 16, 128>}, {transform_indices = @transform_1, window_bounds = array<i64: 128, 128>}, {transform_indices = @transform_2, window_bounds = array<i64: 1, 128>}, {transform_indices = @transform_3, window_bounds = array<i64: 128, 128>}, {pipeline_mode = #tpu.pipeline_mode<synchronous>, transform_indices = @transform_4, window_bounds = array<i64: 1, 128>}, {transform_indices = @transform_5, window_bounds = array<i64: 16, 128>}]} {
    %c0_i32 = arith.constant 0 : i32
    %0 = arith.cmpi eq, %arg1, %c0_i32 : i32
    %1 = arith.extui %0 : i1 to i32
    %c0_i32_0 = arith.constant 0 : i32
    %2 = arith.cmpi ne, %1, %c0_i32_0 : i32
    scf.if %2 {
      %c0_14 = arith.constant 0 : index
      %c0_15 = arith.constant 0 : index
      %20 = vector.load %arg6[%c0_14, %c0_15] : memref<1x128xf32, #tpu.memory_space<vmem>>, vector<1x128xf32>
      %21 = vector.shape_cast %20 : vector<1x128xf32> to vector<1x128xf32>
      %22 = vector.broadcast %21 : vector<1x128xf32> to vector<16x128xf32>
      %c0_16 = arith.constant 0 : index
      %c0_17 = arith.constant 0 : index
      %23 = vector.load %arg7[%c0_16, %c0_17] : memref<16x128xf32, #tpu.memory_space<vmem>>, vector<16x128xf32>
      tpu.vector_store %arg7[%c0_16, %c0_17], %22 {strides = array<i32>} : memref<16x128xf32, #tpu.memory_space<vmem>>, vector<16x128xf32>,
    } else {
    }
    %c0 = arith.constant 0 : index
    %c0_1 = arith.constant 0 : index
    %3 = vector.load %arg2[%c0, %c0_1] : memref<16x128xf32, #tpu.memory_space<vmem>>, vector<16x128xf32>
    %c0_2 = arith.constant 0 : index
    %c0_3 = arith.constant 0 : index
    %4 = vector.load %arg3[%c0_2, %c0_3] : memref<128x128xf32, #tpu.memory_space<vmem>>, vector<128x128xf32>
    %cst = arith.constant dense<0.000000e+00> : vector<16x128xf32>
    %5 = tpu.matmul %3, %4, %cst {dimension_numbers = #tpu.dot_dimension_numbers<[1], [0], [0], [1], [0, 0, 1, 1], [], []>} : vector<16x128xf32>, vector<128x128xf32>, vector<16x128xf32> -> vector<16x128xf32>
    %c0_4 = arith.constant 0 : index
    %c0_5 = arith.constant 0 : index
    %6 = vector.load %arg4[%c0_4, %c0_5] : memref<1x128xf32, #tpu.memory_space<vmem>>, vector<1x128xf32>
    %7 = vector.broadcast %6 : vector<1x128xf32> to vector<16x128xf32>
    %8 = arith.addf %5, %7 : vector<16x128xf32>
    %9 = arith.negf %8 : vector<16x128xf32>
    %10 = math.exp %9 : vector<16x128xf32>
    %cst_6 = arith.constant 1.000000e+00 : f32
    %11 = vector.broadcast %cst_6 : f32 to vector<16x128xf32>
    %12 = arith.addf %11, %10 : vector<16x128xf32>
    %13 = arith.divf %11, %12 : vector<16x128xf32>
    %14 = arith.mulf %8, %13 : vector<16x128xf32>
    %c0_7 = arith.constant 0 : index
    %c0_8 = arith.constant 0 : index
    %15 = vector.load %arg7[%c0_7, %c0_8] : memref<16x128xf32, #tpu.memory_space<vmem>>, vector<16x128xf32>
    %c0_9 = arith.constant 0 : index
    %c0_10 = arith.constant 0 : index
    %16 = vector.load %arg5[%c0_9, %c0_10] : memref<128x128xf32, #tpu.memory_space<vmem>>, vector<128x128xf32>
    %cst_11 = arith.constant dense<0.000000e+00> : vector<16x128xf32>
    %17 = tpu.matmul %14, %16, %cst_11 {dimension_numbers = #tpu.dot_dimension_numbers<[1], [0], [0], [1], [0, 0, 1, 1], [], []>} : vector<16x128xf32>, vector<128x128xf32>, vector<16x128xf32> -> vector<16x128xf32>
    %18 = arith.addf %15, %17 : vector<16x128xf32>
    %c0_12 = arith.constant 0 : index
    %c0_13 = arith.constant 0 : index
    %19 = vector.load %arg7[%c0_12, %c0_13] : memref<16x128xf32, #tpu.memory_space<vmem>>, vector<16x128xf32>
    tpu.vector_store %arg7[%c0_12, %c0_13], %18 {strides = array<i32>} : memref<16x128xf32, #tpu.memory_space<vmem>>, vector<16x128xf32>,
    return
  }
  func.func @transform_0(%arg0: i32, %arg1: i32) -> (i32, i32) {
    %c0_i32 = arith.constant 0 : i32
    %c0_i32_0 = arith.constant 0 : i32
    return %arg0, %c0_i32 : i32, i32
  }
  func.func @transform_1(%arg0: i32, %arg1: i32) -> (i32, i32) {
    %c0_i32 = arith.constant 0 : i32
    %c0_i32_0 = arith.constant 0 : i32
    return %c0_i32, %arg1 : i32, i32
  }
  func.func @transform_2(%arg0: i32, %arg1: i32) -> (i32, i32) {
    %c0_i32 = arith.constant 0 : i32
    %c0_i32_0 = arith.constant 0 : i32
    return %c0_i32, %arg1 : i32, i32
  }
  func.func @transform_3(%arg0: i32, %arg1: i32) -> (i32, i32) {
    %c0_i32 = arith.constant 0 : i32
    %c0_i32_0 = arith.constant 0 : i32
    return %arg1, %c0_i32 : i32, i32
  }
  func.func @transform_4(%arg0: i32, %arg1: i32) -> (i32, i32) {
    %c0_i32 = arith.constant 0 : i32
    %c0_i32_0 = arith.constant 0 : i32
    %c0_i32_1 = arith.constant 0 : i32
    return %c0_i32, %c0_i32_0 : i32, i32
  }
  func.func @transform_5(%arg0: i32, %arg1: i32) -> (i32, i32) {
    %c0_i32 = arith.constant 0 : i32
    %c0_i32_0 = arith.constant 0 : i32
    return %arg0, %c0_i32 : i32, i32
  }
}

</mosaic_0001>

<llo_original>
// kernel: tpu_custom_call.1
$region0: #{tpu_custom_call.1}
  #allocation0 [shape = 'u32[]', space=smem, size = 0x4, offset = 0x4, fixed_abs, tag = 'smem constant byte address 0x4 - core index']
  #allocation1 [shape = 'u32[144,128]{1,0:T(1,128)}', space=vmem, size = 0x12000, scoped, tag = 'internal scratch']
  %s0 = inlined_call_operand.hbm [shape: f32[16,128], index: 0, kind: input, shape index: {}]
  %s1 = inlined_call_operand.hbm [shape: f32[128,128], index: 1, kind: input, shape index: {}]
  %s2 = inlined_call_operand.vmem [shape: f32[1,128], index: 2, kind: input, shape index: {}]
  %s3 = inlined_call_operand.hbm [shape: f32[128,128], index: 3, kind: input, shape index: {}]
  %s4 = inlined_call_operand.vmem [shape: f32[1,128], index: 4, kind: input, shape index: {}]
  %s5 = inlined_call_operand.hbm [shape: f32[16,128], index: 5, kind: output, shape index: {}]
  %s6 = sld [smem:[#allocation0]]
  $region46: #{tpu_custom_call.1} parent=0
    _
  %s8 = ssub.s32 1, %s6
  %s9 = scalar_select 0, %s8, %s6
  $region1: #{tpu_custom_call.1} parent=0
    #allocation2 [shape = 'u8[8192]{0}', space=vmem, size = 0x2000, scoped, tag = 'input window, operand 0, single buffered']
    #allocation3 [shape = 's32[1]{0}', space=sflag, size = 0x4, scoped, tag = 'scoped memory for tpu_custom_call.1']
    #allocation4 [shape = 's32[1]{0}', space=sflag, size = 0x4, scoped, tag = 'scoped memory for tpu_custom_call.1']
    #allocation5 [shape = 'u8[65536]{0}', space=vmem, size = 0x10000, scoped, tag = 'input window, operand 1, single buffered']
    #allocation6 [shape = 's32[1]{0}', space=sflag, size = 0x4, scoped, tag = 'scoped memory for tpu_custom_call.1']
    #allocation7 [shape = 'u8[65536]{0}', space=vmem, size = 0x10000, scoped, tag = 'input window, operand 3, single buffered']
    #allocation8 [shape = 'u8[8192]{0}', space=vmem, size = 0x2000, scoped, tag = 'output window, operand 0, single buffered']
    %10 = vsyncpa [#allocation3], 0
    %11 = vsyncpa [#allocation6], 0
    %12 = vsyncpa [#allocation4], 0
    // Predicated region
    $region2: #{tpu_custom_call.1} parent=1 // pred_check
      _
    $region3: #{tpu_custom_call.1} parent=1 // pred_check_branch
      %14 = sbr.rel (0) target = $region5
    $region4: #{tpu_custom_call.1} parent=1 // pred_region
      %s16 = ssub.s32 256, 256
      %17 = vsyncadd [#allocation3], %s16
      %s18 = sshll.u32 [#allocation2], 4
      %s19 = int_to_ptr.vmem [resolvable:$true] %s18
      %24 = dma.hbm_to_vmem [thread:$0]  %s0, 256, %s19, [#allocation3], 128, 128, 8
    $region5: #{tpu_custom_call.1} parent=1 // pred_fallthru
      _
    // Predicated region
    $region6: #{tpu_custom_call.1} parent=1 // pred_check
      _
    $region7: #{tpu_custom_call.1} parent=1 // pred_check_branch
      %26 = sbr.rel (0) target = $region9
    $region8: #{tpu_custom_call.1} parent=1 // pred_region
      %s28 = ssub.s32 2048, 2048
      %29 = vsyncadd [#allocation6], %s28
      %s30 = sshll.u32 [#allocation5], 4
      %s31 = int_to_ptr.vmem [resolvable:$true] %s30
      %36 = dma.hbm_to_vmem [thread:$0]  %s1, 2048, %s31, [#allocation6], 128, 128, 8
    $region9: #{tpu_custom_call.1} parent=1 // pred_fallthru
      _
    // Predicated region
    $region10: #{tpu_custom_call.1} parent=1 // pred_check
      _
    $region11: #{tpu_custom_call.1} parent=1 // pred_check_branch
      %38 = sbr.rel (0) target = $region13
    $region12: #{tpu_custom_call.1} parent=1 // pred_region
      _
    $region13: #{tpu_custom_call.1} parent=1 // pred_fallthru
      _
    // Predicated region
    $region14: #{tpu_custom_call.1} parent=1 // pred_check
      _
    $region15: #{tpu_custom_call.1} parent=1 // pred_check_branch
      %40 = sbr.rel (0) target = $region17
    $region16: #{tpu_custom_call.1} parent=1 // pred_region
      %s42 = ssub.s32 2048, 2048
      %43 = vsyncadd [#allocation6], %s42
      %s44 = sshll.u32 [#allocation7], 4
      %s45 = int_to_ptr.vmem [resolvable:$true] %s44
      %50 = dma.hbm_to_vmem [thread:$0]  %s3, 2048, %s45, [#allocation6], 128, 128, 8
    $region17: #{tpu_custom_call.1} parent=1 // pred_fallthru
      _
    // Predicated region
    $region18: #{tpu_custom_call.1} parent=1 // pred_check
      _
    $region19: #{tpu_custom_call.1} parent=1 // pred_check_branch
      %52 = sbr.rel (0) target = $region21
    $region20: #{tpu_custom_call.1} parent=1 // pred_region
      _
    $region21: #{tpu_custom_call.1} parent=1 // pred_fallthru
      _
    // Predicated region
    $region22: #{tpu_custom_call.1} parent=1 // pred_check
      _
    $region23: #{tpu_custom_call.1} parent=1 // pred_check_branch
      %54 = sbr.rel (0) target = $region25
    $region24: #{tpu_custom_call.1} parent=1 // pred_region
      %55 = dma.done [#allocation3], 256
    $region25: #{tpu_custom_call.1} parent=1 // pred_fallthru
      _
    // Predicated region
    $region26: #{tpu_custom_call.1} parent=1 // pred_check
      _
    $region27: #{tpu_custom_call.1} parent=1 // pred_check_branch
      %57 = sbr.rel (0) target = $region29
    $region28: #{tpu_custom_call.1} parent=1 // pred_region
      %58 = dma.done [#allocation6], 2048
    $region29: #{tpu_custom_call.1} parent=1 // pred_fallthru
      _
    // Predicated region
    $region30: #{tpu_custom_call.1} parent=1 // pred_check
      _
    $region31: #{tpu_custom_call.1} parent=1 // pred_check_branch
      %60 = sbr.rel (0) target = $region33
    $region32: #{tpu_custom_call.1} parent=1 // pred_region
      %61 = dma.done [#allocation6], 2048
    $region33: #{tpu_custom_call.1} parent=1 // pred_fallthru
      _
    %p62 = scmp.eq.s32.totalorder 0, 0
    // Predicated region
    $region34: #{tpu_custom_call.1} parent=1 // pred_check
      %p63 = pneg %p62
    $region35: #{tpu_custom_call.1} parent=1 // pred_check_branch
      %65 = sbr.rel (%p63) target = $region37
    $region36: #{tpu_custom_call.1} parent=1 // pred_region
      %v66 = vld [vmem:[%s4] sm:$0x1]
      %v68 = vlaneseq
      %v69 = vshrl.u32 %v68, 7
      %v70 = vsub.s32 0, %v69
      %v71 = vrot.slane %v66, %v70
      %73 = vst [vmem:[#allocation8] sm:$0xff] %v71
      %74 = vst [vmem:[#allocation8 + $0x8] sm:$0xff] %v71
    $region37: #{tpu_custom_call.1} parent=1 // pred_fallthru
      _
    %v75 = vld [vmem:[#allocation2] sm:$0xff]
    %v76 = vld [vmem:[#allocation2 + $0x8] sm:$0xff]
    %v77 = vld [vmem:[#allocation5] sm:$0xff]
    %v78 = vld [vmem:[#allocation5 + $0x8] sm:$0xff]
    %v79 = vld [vmem:[#allocation5 + $0x10] sm:$0xff]
    %v80 = vld [vmem:[#allocation5 + $0x18] sm:$0xff]
    %v81 = vld [vmem:[#allocation5 + $0x20] sm:$0xff]
    %v82 = vld [vmem:[#allocation5 + $0x28] sm:$0xff]
    %v83 = vld [vmem:[#allocation5 + $0x30] sm:$0xff]
    %v84 = vld [vmem:[#allocation5 + $0x38] sm:$0xff]
    %v85 = vld [vmem:[#allocation5 + $0x40] sm:$0xff]
    %v86 = vld [vmem:[#allocation5 + $0x48] sm:$0xff]
    %v87 = vld [vmem:[#allocation5 + $0x50] sm:$0xff]
    %v88 = vld [vmem:[#allocation5 + $0x58] sm:$0xff]
    %v89 = vld [vmem:[#allocation5 + $0x60] sm:$0xff]
    %v90 = vld [vmem:[#allocation5 + $0x68] sm:$0xff]
    %v91 = vld [vmem:[#allocation5 + $0x70] sm:$0xff]
    %v92 = vld [vmem:[#allocation5 + $0x78] sm:$0xff]
    %v93 = vld [vmem:[%s2] sm:$0x1]
    %v95 = vlaneseq
    %v96 = vshrl.u32 %v95, 7
    %v97 = vsub.s32 0, %v96
    %v98 = vrot.slane %v93, %v97
    %100 = vmatprep.subr.mxu0 0.0
    %101 = vmatpush1.msra.mxu0 %v92
    %102 = vmatprep.subr.mxu0 0.0
    %103 = vmatpush1.msra.mxu0 %v91
    %104 = vmatprep.subr.mxu0 0.0
    %105 = vmatpush1.msra.mxu0 %v90
    %106 = vmatprep.subr.mxu0 0.0
    %107 = vmatpush1.msra.mxu0 %v89
    %108 = vmatprep.subr.mxu0 0.0
    %109 = vmatpush1.msra.mxu0 %v88
    %110 = vmatprep.subr.mxu0 0.0
    %111 = vmatpush1.msra.mxu0 %v87
    %112 = vmatprep.subr.mxu0 0.0
    %113 = vmatpush1.msra.mxu0 %v86
    %114 = vmatprep.subr.mxu0 0.0
    %115 = vmatpush1.msra.mxu0 %v85
    %116 = vmatprep.subr.mxu0 0.0
    %117 = vmatpush1.msra.mxu0 %v84
    %118 = vmatprep.subr.mxu0 0.0
    %119 = vmatpush1.msra.mxu0 %v83
    %120 = vmatprep.subr.mxu0 0.0
    %121 = vmatpush1.msra.mxu0 %v82
    %122 = vmatprep.subr.mxu0 0.0
    %123 = vmatpush1.msra.mxu0 %v81
    %124 = vmatprep.subr.mxu0 0.0
    %125 = vmatpush1.msra.mxu0 %v80
    %126 = vmatprep.subr.mxu0 0.0
    %127 = vmatpush1.msra.mxu0 %v79
    %128 = vmatprep.subr.mxu0 0.0
    %129 = vmatpush1.msra.mxu0 %v78
    %130 = vmatprep.subr.mxu0 0.0
    %131 = vmatpush1.msra.mxu0 %v77
    %132 = vmatprep.subr.mxu0 0.0
    %133 = vmatpush2.msra.mxu0 0.0
    %134 = vmatprep.subr.mxu0 0.0
    %135 = vmatpush2.msra.mxu0 0.0
    %136 = vmatprep.subr.mxu0 0.0
    %137 = vmatpush2.msra.mxu0 0.0
    %138 = vmatprep.subr.mxu0 0.0
    %139 = vmatpush2.msra.mxu0 0.0
    %140 = vmatprep.subr.mxu0 0.0
    %141 = vmatpush2.msra.mxu0 0.0
    %142 = vmatprep.subr.mxu0 0.0
    %143 = vmatpush2.msra.mxu0 0.0
    %144 = vmatprep.subr.mxu0 0.0
    %145 = vmatpush2.msra.mxu0 0.0
    %146 = vmatprep.subr.mxu0 0.0
    %147 = vmatpush2.msra.mxu0 0.0
    %148 = vmatprep.subr.mxu0 0.0
    %149 = vmatpush2.msra.mxu0 0.0
    %150 = vmatprep.subr.mxu0 0.0
    %151 = vmatpush2.msra.mxu0 0.0
    %152 = vmatprep.subr.mxu0 0.0
    %153 = vmatpush2.msra.mxu0 0.0
    %154 = vmatprep.subr.mxu0 0.0
    %155 = vmatpush2.msra.mxu0 0.0
    %156 = vmatprep.subr.mxu0 0.0
    %157 = vmatpush2.msra.mxu0 0.0
    %158 = vmatprep.subr.mxu0 0.0
    %159 = vmatpush2.msra.mxu0 0.0
    %160 = vmatprep.subr.mxu0 0.0
    %161 = vmatpush2.msra.mxu0 0.0
    %162 = vmatprep.subr.mxu0 0.0
    %163 = vmatpush2.msra.mxu0 0.0
    %164 = vmatprep.mubr.f32.mxu0 0.0
    %165 = vmatmul.mubr.f32.gmra.mxu0 %v75
    %v166 = vpop.f32.mrf.mxu0
    %v167 = vadd.f32 %v98, %v166
    %v168 = vpop.f32.mrf.mxu0
    %169 = vmatprep.mubr.f32.mxu0 0.0
    %170 = vmatmul.mubr.f32.gmra.mxu0 %v76
    %v171 = vpop.f32.mrf.mxu0
    %v172 = vadd.f32 %v98, %v171
    %v173 = vpop.f32.mrf.mxu0
    %174 = vdwg.mxu0
    %v175 = vxor.u32 %v167, 2147483648
    %v176 = vxor.u32 %v172, 2147483648
    %v177 = vmul.f32 %v175, 1.442695
    %v178 = vpow.pop %v177
    %v179 = vmul.f32 %v176, 1.442695
    %v180 = vpow.pop %v179
    %v181 = vadd.f32 %v178, 1.0
    %v182 = vadd.f32 %v180, 1.0
    %v183 = vrcp.pop %v181
    %v184 = vmul.f32 1.0, %v183
    %v185 = vrcp.pop %v182
    %v186 = vmul.f32 1.0, %v185
    %v187 = vmul.f32 %v167, %v184
    %v188 = vmul.f32 %v172, %v186
    %v189 = vld [vmem:[#allocation8] sm:$0xff]
    %v190 = vld [vmem:[#allocation8 + $0x8] sm:$0xff]
    %v191 = vld [vmem:[#allocation7] sm:$0xff]
    %v192 = vld [vmem:[#allocation7 + $0x8] sm:$0xff]
    %v193 = vld [vmem:[#allocation7 + $0x10] sm:$0xff]
    %v194 = vld [vmem:[#allocation7 + $0x18] sm:$0xff]
    %v195 = vld [vmem:[#allocation7 + $0x20] sm:$0xff]
    %v196 = vld [vmem:[#allocation7 + $0x28] sm:$0xff]
    %v197 = vld [vmem:[#allocation7 + $0x30] sm:$0xff]
    %v198 = vld [vmem:[#allocation7 + $0x38] sm:$0xff]
    %v199 = vld [vmem:[#allocation7 + $0x40] sm:$0xff]
    %v200 = vld [vmem:[#allocation7 + $0x48] sm:$0xff]
    %v201 = vld [vmem:[#allocation7 + $0x50] sm:$0xff]
    %v202 = vld [vmem:[#allocation7 + $0x58] sm:$0xff]
    %v203 = vld [vmem:[#allocation7 + $0x60] sm:$0xff]
    %v204 = vld [vmem:[#allocation7 + $0x68] sm:$0xff]
    %v205 = vld [vmem:[#allocation7 + $0x70] sm:$0xff]
    %v206 = vld [vmem:[#allocation7 + $0x78] sm:$0xff]
    %207 = vmatprep.subr.mxu0 0.0
    %208 = vmatpush1.msra.mxu0 %v206
    %209 = vmatprep.subr.mxu0 0.0
    %210 = vmatpush1.msra.mxu0 %v205
    %211 = vmatprep.subr.mxu0 0.0
    %212 = vmatpush1.msra.mxu0 %v204
    %213 = vmatprep.subr.mxu0 0.0
    %214 = vmatpush1.msra.mxu0 %v203
    %215 = vmatprep.subr.mxu0 0.0
    %216 = vmatpush1.msra.mxu0 %v202
    %217 = vmatprep.subr.mxu0 0.0
    %218 = vmatpush1.msra.mxu0 %v201
    %219 = vmatprep.subr.mxu0 0.0
    %220 = vmatpush1.msra.mxu0 %v200
    %221 = vmatprep.subr.mxu0 0.0
    %222 = vmatpush1.msra.mxu0 %v199
    %223 = vmatprep.subr.mxu0 0.0
    %224 = vmatpush1.msra.mxu0 %v198
    %225 = vmatprep.subr.mxu0 0.0
    %226 = vmatpush1.msra.mxu0 %v197
    %227 = vmatprep.subr.mxu0 0.0
    %228 = vmatpush1.msra.mxu0 %v196
    %229 = vmatprep.subr.mxu0 0.0
    %230 = vmatpush1.msra.mxu0 %v195
    %231 = vmatprep.subr.mxu0 0.0
    %232 = vmatpush1.msra.mxu0 %v194
    %233 = vmatprep.subr.mxu0 0.0
    %234 = vmatpush1.msra.mxu0 %v193
    %235 = vmatprep.subr.mxu0 0.0
    %236 = vmatpush1.msra.mxu0 %v192
    %237 = vmatprep.subr.mxu0 0.0
    %238 = vmatpush1.msra.mxu0 %v191
    %239 = vmatprep.subr.mxu0 0.0
    %240 = vmatpush2.msra.mxu0 0.0
    %241 = vmatprep.subr.mxu0 0.0
    %242 = vmatpush2.msra.mxu0 0.0
    %243 = vmatprep.subr.mxu0 0.0
    %244 = vmatpush2.msra.mxu0 0.0
    %245 = vmatprep.subr.mxu0 0.0
    %246 = vmatpush2.msra.mxu0 0.0
    %247 = vmatprep.subr.mxu0 0.0
    %248 = vmatpush2.msra.mxu0 0.0
    %249 = vmatprep.subr.mxu0 0.0
    %250 = vmatpush2.msra.mxu0 0.0
    %251 = vmatprep.subr.mxu0 0.0
    %252 = vmatpush2.msra.mxu0 0.0
    %253 = vmatprep.subr.mxu0 0.0
    %254 = vmatpush2.msra.mxu0 0.0
    %255 = vmatprep.subr.mxu0 0.0
    %256 = vmatpush2.msra.mxu0 0.0
    %257 = vmatprep.subr.mxu0 0.0
    %258 = vmatpush2.msra.mxu0 0.0
    %259 = vmatprep.subr.mxu0 0.0
    %260 = vmatpush2.msra.mxu0 0.0
    %261 = vmatprep.subr.mxu0 0.0
    %262 = vmatpush2.msra.mxu0 0.0
    %263 = vmatprep.subr.mxu0 0.0
    %264 = vmatpush2.msra.mxu0 0.0
    %265 = vmatprep.subr.mxu0 0.0
    %266 = vmatpush2.msra.mxu0 0.0
    %267 = vmatprep.subr.mxu0 0.0
    %268 = vmatpush2.msra.mxu0 0.0
    %269 = vmatprep.subr.mxu0 0.0
    %270 = vmatpush2.msra.mxu0 0.0
    %271 = vmatprep.mubr.f32.mxu0 0.0
    %272 = vmatmul.mubr.f32.gmra.mxu0 %v187
    %v273 = vpop.f32.mrf.mxu0
    %v274 = vadd.f32 0.0, %v273
    %v275 = vpop.f32.mrf.mxu0
    %276 = vmatprep.mubr.f32.mxu0 0.0
    %277 = vmatmul.mubr.f32.gmra.mxu0 %v188
    %v278 = vpop.f32.mrf.mxu0
    %v279 = vadd.f32 0.0, %v278
    %v280 = vpop.f32.mrf.mxu0
    %281 = vdwg.mxu0
    %v282 = vadd.f32 %v189, %v274
    %v283 = vadd.f32 %v190, %v279
    %284 = vst [vmem:[#allocation8] sm:$0xff] %v282
    %285 = vst [vmem:[#allocation8 + $0x8] sm:$0xff] %v283
    // Predicated region
    $region38: #{tpu_custom_call.1} parent=1 // pred_check
      _
    $region39: #{tpu_custom_call.1} parent=1 // pred_check_branch
      %287 = sbr.rel (0) target = $region41
    $region40: #{tpu_custom_call.1} parent=1 // pred_region
      %s289 = ssub.s32 256, 256
      %290 = vsyncadd [#allocation4], %s289
      %s291 = sshll.u32 [#allocation8], 4
      %s292 = int_to_ptr.vmem [resolvable:$true] %s291
      %297 = dma.vmem_to_hbm [thread:$0]  %s292, 256, %s5, [#allocation4], 128, 128, 8
    $region41: #{tpu_custom_call.1} parent=1 // pred_fallthru
      _
    // Predicated region
    $region42: #{tpu_custom_call.1} parent=1 // pred_check
      _
    $region43: #{tpu_custom_call.1} parent=1 // pred_check_branch
      %299 = sbr.rel (0) target = $region45
    $region44: #{tpu_custom_call.1} parent=1 // pred_region
      %300 = dma.done [#allocation4], 256
    $region45: #{tpu_custom_call.1} parent=1 // pred_fallthru
      _
    %301 = vsyncpa [#allocation3], 1
    %302 = vsyncpa [#allocation6], 1
    %303 = vsyncpa [#allocation4], 1

</llo_original>
